<compile_context>
chip_gen: v7x
topology: tpu7x:2x2x1
jax: 0.10.0
libtpu: 0.0.40
codegen_flags: <defaults>
</compile_context>

<pallas_src>
import math
from functools import partial

import jax
import jax.numpy as jnp
from jax.experimental import pallas as pl
from jax.experimental.pallas import tpu as pltpu


def _round_up(x, m):
    return (x + m - 1) // m * m


def _running_on_v5():
    """v5e/v5p have a 128-wide MXU -> prefer the split K=128 dots there."""
    try:
        kind = jax.devices()[0].device_kind.lower()
    except Exception:
        return False
    return "v5" in kind


def timestep_embedder_kernel(t_ref, freqs_ref, w1_ref, b1_ref, w2_ref, b2_ref,
                             o_ref, *, half, split_k, compute_dtype):
    # t_ref     : [Bp, 1]        f32
    # freqs_ref : [1, half]      f32   (precomputed constant table)
    # w1_ref    : [2*half, Hp]   compute_dtype  (rows [:half]=cos, [half:]=sin)
    # b1_ref    : [1, Hp]        f32
    # w2_ref    : [Hp, Hp]       compute_dtype
    # b2_ref    : [1, Hp]        f32
    # o_ref     : [Bp, Hp]

    # Sinusoidal embedding; transcendentals stay f32 (no bf16 EUP on v5e).
    args = t_ref[...] * freqs_ref[...]                      # [Bp, half] f32
    cos_e = jnp.cos(args)
    sin_e = jnp.sin(args)

    if split_k:
        # v5e: two K=half dots; avoids the concat entirely.
        h = (jnp.dot(cos_e.astype(compute_dtype), w1_ref[:half, :],
                     preferred_element_type=jnp.float32)
             + jnp.dot(sin_e.astype(compute_dtype), w1_ref[half:, :],
                       preferred_element_type=jnp.float32)
             + b1_ref[...])
    else:
        # v6e/v7x: one K=2*half dot fills the 256-wide MXU.  With half a
        # multiple of 128 the concat boundary is whole-vreg aligned (free).
        emb = jnp.concatenate([cos_e, sin_e], axis=-1).astype(compute_dtype)
        h = (jnp.dot(emb, w1_ref[...], preferred_element_type=jnp.float32)
             + b1_ref[...])

    # SiLU in f32 (VPU + EUP).
    h = h * jax.nn.sigmoid(h)

    out = jnp.dot(h.astype(compute_dtype), w2_ref[...],
                  preferred_element_type=jnp.float32) + b2_ref[...]
    o_ref[...] = out.astype(o_ref.dtype)


def prepare_timestep_embedder_params(w1, b1, w2, b2, *, freq_dim=256,
                                     max_period=10000,
                                     weight_dtype=jnp.bfloat16):
    """One-time parameter prep: pad, cast, and build the frequency table.

    w1: [freq_dim, hidden]  (transpose of PyTorch's Linear weight)
    w2: [hidden, hidden]
    Returns a dict of device arrays + static metadata; reuse across calls.
    """
    # Odd frequency_embedding_size (zero-pad branch) is not supported.
    assert freq_dim % 2 == 0, "odd frequency_embedding_size is not supported"
    half = freq_dim // 2
    hidden = w2.shape[1]
    assert w1.shape == (freq_dim, hidden)
    assert w2.shape == (hidden, hidden)

    Hp = _round_up(hidden, 128)   # lane-dense hidden

    w1p = jnp.zeros((freq_dim, Hp), weight_dtype).at[:, :hidden].set(
        w1.astype(weight_dtype))
    w2p = jnp.zeros((Hp, Hp), weight_dtype).at[:hidden, :hidden].set(
        w2.astype(weight_dtype))
    b1p = jnp.zeros((1, Hp), jnp.float32).at[0, :hidden].set(
        b1.astype(jnp.float32))
    b2p = jnp.zeros((1, Hp), jnp.float32).at[0, :hidden].set(
        b2.astype(jnp.float32))
    freqs = jnp.exp(
        (-math.log(float(max_period)) / half)
        * jnp.arange(half, dtype=jnp.float32))[None, :]     # [1, half]

    return dict(w1=w1p, b1=b1p, w2=w2p, b2=b2p, freqs=freqs,
                half=half, hidden=hidden, Hp=Hp,
                weight_dtype=jnp.dtype(weight_dtype))


def timestep_embedder_fwd(t, params, *, split_k=None,
                          out_dtype=jnp.float32, keep_padded=False):
    """t: [B] float -> [B, hidden] (or padded [Bp, Hp] if keep_padded)."""
    half = params["half"]
    hidden = params["hidden"]
    Hp = params["Hp"]
    weight_dtype = params["weight_dtype"]
    freq_dim = 2 * half

    if split_k is None:
        # Fused K=2*half dot only when the concat is vreg-aligned and the MXU
        # is 256-wide; otherwise the split form.
        split_k = _running_on_v5() or (half % 128 != 0)

    B = t.shape[0]
    sub = 16 if weight_dtype.itemsize == 2 else 8   # full packed bf16 tiles
    Bp = _round_up(B, sub)

    t_pad = jnp.zeros((Bp, 1), jnp.float32).at[:B, 0].set(t.astype(jnp.float32))

    kernel = partial(timestep_embedder_kernel, half=half, split_k=split_k,
                     compute_dtype=weight_dtype)

    vmem = pl.BlockSpec(memory_space=pltpu.MemorySpace.VMEM)

    wbytes = weight_dtype.itemsize
    flops = 2 * Bp * freq_dim * Hp + 2 * Bp * Hp * Hp + 4 * Bp * Hp
    transcendentals = 2 * Bp * half + Bp * Hp           # cos + sin + sigmoid
    bytes_accessed = (Bp * 4 + half * 4 + 2 * Hp * 4
                      + (freq_dim * Hp + Hp * Hp) * wbytes
                      + Bp * Hp * jnp.dtype(out_dtype).itemsize)

    out_padded = pl.pallas_call(
        kernel,
        out_shape=jax.ShapeDtypeStruct((Bp, Hp), out_dtype),
        grid=(),
        in_specs=[vmem, vmem, vmem, vmem, vmem, vmem],
        out_specs=vmem,
        cost_estimate=pl.CostEstimate(
            flops=int(flops),
            transcendentals=int(transcendentals),
            bytes_accessed=int(bytes_accessed)),
    )(t_pad, params["freqs"], params["w1"], params["b1"],
      params["w2"], params["b2"])

    if keep_padded:
        return out_padded
    return out_padded[:B, :hidden]


if __name__ == "__main__":
    B = 8
    hidden_size = 32
    freq_dim = 256

    key = jax.random.PRNGKey(0)
    k_t, k_w1, k_b1, k_w2, k_b2 = jax.random.split(key, 5)

    # Deterministic synthetic parameters (Linear weights stored [in, out] =
    # transpose of PyTorch's weight).
    t = jax.random.uniform(k_t, (B,), jnp.float32) * 1000.0
    w1 = jax.random.normal(k_w1, (freq_dim, hidden_size), jnp.float32) * 0.02
    b1 = jax.random.normal(k_b1, (hidden_size,), jnp.float32) * 0.02
    w2 = jax.random.normal(k_w2, (hidden_size, hidden_size), jnp.float32) * 0.02
    b2 = jax.random.normal(k_b2, (hidden_size,), jnp.float32) * 0.02

    # Parameter prep (padding / bf16 cast / freq table) done ONCE, not per call.
    params_bf16 = prepare_timestep_embedder_params(
        w1, b1, w2, b2, freq_dim=freq_dim, weight_dtype=jnp.bfloat16)
    params_f32 = prepare_timestep_embedder_params(
        w1, b1, w2, b2, freq_dim=freq_dim, weight_dtype=jnp.float32)

    out_bf16 = jax.block_until_ready(timestep_embedder_fwd(t, params_bf16))
    out_f32 = jax.block_until_ready(timestep_embedder_fwd(t, params_f32))

    # Pure-JAX f32 reference = exact PyTorch module math.
    half = freq_dim // 2
    freqs = jnp.exp(-math.log(10000.0)
                    * jnp.arange(half, dtype=jnp.float32) / half)
    args = t[:, None] * freqs[None]
    emb = jnp.concatenate([jnp.cos(args), jnp.sin(args)], axis=-1)
    h = emb @ w1 + b1
    h = h * jax.nn.sigmoid(h)
    ref = h @ w2 + b2

    assert out_bf16.shape == (B, hidden_size)
    assert out_f32.shape == (B, hidden_size)
    # f32-weight kernel vs exact f32 reference (tight).
    assert jnp.allclose(out_f32, ref, atol=1e-3, rtol=1e-3), (
        float(jnp.max(jnp.abs(out_f32 - ref))))
    # bf16-weight kernel vs true f32 reference (quantization error budget).
    assert jnp.allclose(out_bf16, ref, atol=5e-2, rtol=5e-2), (
        float(jnp.max(jnp.abs(out_bf16 - ref))))
    print("KERNEL_OK")
</pallas_src>

<mosaic_0001>
module attributes {stable_mosaic.version = 11 : i64} {
  func.func @timestep_embedder_kernel(%arg0: memref<16x1xf32, #tpu.memory_space<vmem>>, %arg1: memref<1x128xf32, #tpu.memory_space<vmem>>, %arg2: memref<256x128xbf16, #tpu.memory_space<vmem>>, %arg3: memref<1x128xf32, #tpu.memory_space<vmem>>, %arg4: memref<128x128xbf16, #tpu.memory_space<vmem>>, %arg5: memref<1x128xf32, #tpu.memory_space<vmem>>, %arg6: memref<16x128xf32, #tpu.memory_space<vmem>>) attributes {dimension_semantics = [], scalar_prefetch = 0 : i64, scratch_operands = 0 : i64, tpu.core_type = #tpu.core_type<tc>} {
    %c0 = arith.constant 0 : index
    %c0_0 = arith.constant 0 : index
    %0 = vector.load %arg0[%c0, %c0_0] : memref<16x1xf32, #tpu.memory_space<vmem>>, vector<16x1xf32>
    %c0_1 = arith.constant 0 : index
    %c0_2 = arith.constant 0 : index
    %1 = vector.load %arg1[%c0_1, %c0_2] : memref<1x128xf32, #tpu.memory_space<vmem>>, vector<1x128xf32>
    %2 = vector.broadcast %0 : vector<16x1xf32> to vector<16x128xf32>
    %3 = vector.broadcast %1 : vector<1x128xf32> to vector<16x128xf32>
    %4 = arith.mulf %2, %3 : vector<16x128xf32>
    %5 = math.cos %4 : vector<16x128xf32>
    %6 = math.sin %4 : vector<16x128xf32>
    %7 = tpu.concatenate %5, %6 in 1 : vector<16x128xf32>, vector<16x128xf32> -> vector<16x256xf32>
    %8 = arith.truncf %7 : vector<16x256xf32> to vector<16x256xbf16>
    %c0_3 = arith.constant 0 : index
    %c0_4 = arith.constant 0 : index
    %9 = vector.load %arg2[%c0_3, %c0_4] : memref<256x128xbf16, #tpu.memory_space<vmem>>, vector<256x128xbf16>
    %cst = arith.constant dense<0.000000e+00> : vector<16x128xf32>
    %10 = tpu.matmul %8, %9, %cst {dimension_numbers = #tpu.dot_dimension_numbers<[1], [0], [0], [1], [0, 0, 1, 1], [], []>} : vector<16x256xbf16>, vector<256x128xbf16>, vector<16x128xf32> -> vector<16x128xf32>
    %c0_5 = arith.constant 0 : index
    %c0_6 = arith.constant 0 : index
    %11 = vector.load %arg3[%c0_5, %c0_6] : memref<1x128xf32, #tpu.memory_space<vmem>>, vector<1x128xf32>
    %12 = vector.broadcast %11 : vector<1x128xf32> to vector<16x128xf32>
    %13 = arith.addf %10, %12 : vector<16x128xf32>
    %14 = arith.negf %13 : vector<16x128xf32>
    %15 = math.exp %14 : vector<16x128xf32>
    %cst_7 = arith.constant 1.000000e+00 : f32
    %16 = vector.broadcast %cst_7 : f32 to vector<16x128xf32>
    %17 = arith.addf %16, %15 : vector<16x128xf32>
    %18 = arith.divf %16, %17 : vector<16x128xf32>
    %19 = arith.mulf %13, %18 : vector<16x128xf32>
    %20 = arith.truncf %19 : vector<16x128xf32> to vector<16x128xbf16>
    %c0_8 = arith.constant 0 : index
    %c0_9 = arith.constant 0 : index
    %21 = vector.load %arg4[%c0_8, %c0_9] : memref<128x128xbf16, #tpu.memory_space<vmem>>, vector<128x128xbf16>
    %cst_10 = arith.constant dense<0.000000e+00> : vector<16x128xf32>
    %22 = tpu.matmul %20, %21, %cst_10 {dimension_numbers = #tpu.dot_dimension_numbers<[1], [0], [0], [1], [0, 0, 1, 1], [], []>} : vector<16x128xbf16>, vector<128x128xbf16>, vector<16x128xf32> -> vector<16x128xf32>
    %c0_11 = arith.constant 0 : index
    %c0_12 = arith.constant 0 : index
    %23 = vector.load %arg5[%c0_11, %c0_12] : memref<1x128xf32, #tpu.memory_space<vmem>>, vector<1x128xf32>
    %24 = vector.broadcast %23 : vector<1x128xf32> to vector<16x128xf32>
    %25 = arith.addf %22, %24 : vector<16x128xf32>
    %c0_13 = arith.constant 0 : index
    %c0_14 = arith.constant 0 : index
    %26 = vector.load %arg6[%c0_13, %c0_14] : memref<16x128xf32, #tpu.memory_space<vmem>>, vector<16x128xf32>
    tpu.vector_store %arg6[%c0_13, %c0_14], %25 {strides = array<i32>} : memref<16x128xf32, #tpu.memory_space<vmem>>, vector<16x128xf32>,
    return
  }
}

</mosaic_0001>

<llo_original>
// kernel: tpu_custom_call.1
$region0: #{tpu_custom_call.1}
  #allocation0 [shape = 'u32[]', space=smem, size = 0x4, offset = 0x4, fixed_abs, tag = 'smem constant byte address 0x4 - core index']
  #allocation1 [shape = 'u32[144,128]{1,0:T(1,128)}', space=vmem, size = 0x12000, scoped, tag = 'internal scratch']
  %s0 = inlined_call_operand.vmem [shape: f32[16,1], index: 0, kind: input, shape index: {}]
  %s1 = inlined_call_operand.vmem [shape: f32[1,128], index: 1, kind: input, shape index: {}]
  %s2 = inlined_call_operand.hbm [shape: bf16[256,128], index: 2, kind: input, shape index: {}]
  %s3 = inlined_call_operand.vmem [shape: f32[1,128], index: 3, kind: input, shape index: {}]
  %s4 = inlined_call_operand.hbm [shape: bf16[128,128], index: 4, kind: input, shape index: {}]
  %s5 = inlined_call_operand.vmem [shape: f32[1,128], index: 5, kind: input, shape index: {}]
  %s6 = inlined_call_operand.hbm [shape: f32[16,128], index: 6, kind: output, shape index: {}]
  %s7 = sld [smem:[#allocation0]]
  $region42: #{tpu_custom_call.1} parent=0
    _
  %s9 = ssub.s32 1, %s7
  %s10 = scalar_select 0, %s9, %s7
  $region1: #{tpu_custom_call.1} parent=0
    #allocation2 [shape = 'u8[65536]{0}', space=vmem, size = 0x10000, scoped, tag = 'input window, operand 2, single buffered']
    #allocation3 [shape = 's32[1]{0}', space=sflag, size = 0x4, scoped, tag = 'scoped memory for tpu_custom_call.1']
    #allocation4 [shape = 's32[1]{0}', space=sflag, size = 0x4, scoped, tag = 'scoped memory for tpu_custom_call.1']
    #allocation5 [shape = 'u8[32768]{0}', space=vmem, size = 0x8000, scoped, tag = 'input window, operand 4, single buffered']
    #allocation6 [shape = 's32[1]{0}', space=sflag, size = 0x4, scoped, tag = 'scoped memory for tpu_custom_call.1']
    #allocation7 [shape = 'u8[8192]{0}', space=vmem, size = 0x2000, scoped, tag = 'output window, operand 0, single buffered']
    %11 = vsyncpa [#allocation3], 0
    %12 = vsyncpa [#allocation6], 0
    %13 = vsyncpa [#allocation4], 0
    // Predicated region
    $region2: #{tpu_custom_call.1} parent=1 // pred_check
      _
    $region3: #{tpu_custom_call.1} parent=1 // pred_check_branch
      %15 = sbr.rel (0) target = $region5
    $region4: #{tpu_custom_call.1} parent=1 // pred_region
      _
    $region5: #{tpu_custom_call.1} parent=1 // pred_fallthru
      _
    // Predicated region
    $region6: #{tpu_custom_call.1} parent=1 // pred_check
      _
    $region7: #{tpu_custom_call.1} parent=1 // pred_check_branch
      %17 = sbr.rel (0) target = $region9
    $region8: #{tpu_custom_call.1} parent=1 // pred_region
      _
    $region9: #{tpu_custom_call.1} parent=1 // pred_fallthru
      _
    // Predicated region
    $region10: #{tpu_custom_call.1} parent=1 // pred_check
      _
    $region11: #{tpu_custom_call.1} parent=1 // pred_check_branch
      %19 = sbr.rel (0) target = $region13
    $region12: #{tpu_custom_call.1} parent=1 // pred_region
      %s21 = ssub.s32 2048, 2048
      %22 = vsyncadd [#allocation3], %s21
      %s23 = sshll.u32 [#allocation2], 4
      %s24 = int_to_ptr.vmem [resolvable:$true] %s23
      %29 = dma.hbm_to_vmem [thread:$0]  %s2, 2048, %s24, [#allocation3], 64, 64, 4
    $region13: #{tpu_custom_call.1} parent=1 // pred_fallthru
      _
    // Predicated region
    $region14: #{tpu_custom_call.1} parent=1 // pred_check
      _
    $region15: #{tpu_custom_call.1} parent=1 // pred_check_branch
      %31 = sbr.rel (0) target = $region17
    $region16: #{tpu_custom_call.1} parent=1 // pred_region
      _
    $region17: #{tpu_custom_call.1} parent=1 // pred_fallthru
      _
    // Predicated region
    $region18: #{tpu_custom_call.1} parent=1 // pred_check
      _
    $region19: #{tpu_custom_call.1} parent=1 // pred_check_branch
      %33 = sbr.rel (0) target = $region21
    $region20: #{tpu_custom_call.1} parent=1 // pred_region
      %s35 = ssub.s32 1024, 1024
      %36 = vsyncadd [#allocation6], %s35
      %s37 = sshll.u32 [#allocation5], 4
      %s38 = int_to_ptr.vmem [resolvable:$true] %s37
      %43 = dma.hbm_to_vmem [thread:$0]  %s4, 1024, %s38, [#allocation6], 64, 64, 4
    $region21: #{tpu_custom_call.1} parent=1 // pred_fallthru
      _
    // Predicated region
    $region22: #{tpu_custom_call.1} parent=1 // pred_check
      _
    $region23: #{tpu_custom_call.1} parent=1 // pred_check_branch
      %45 = sbr.rel (0) target = $region25
    $region24: #{tpu_custom_call.1} parent=1 // pred_region
      _
    $region25: #{tpu_custom_call.1} parent=1 // pred_fallthru
      _
    // Predicated region
    $region26: #{tpu_custom_call.1} parent=1 // pred_check
      _
    $region27: #{tpu_custom_call.1} parent=1 // pred_check_branch
      %47 = sbr.rel (0) target = $region29
    $region28: #{tpu_custom_call.1} parent=1 // pred_region
      %48 = dma.done [#allocation3], 2048
    $region29: #{tpu_custom_call.1} parent=1 // pred_fallthru
      _
    // Predicated region
    $region30: #{tpu_custom_call.1} parent=1 // pred_check
      _
    $region31: #{tpu_custom_call.1} parent=1 // pred_check_branch
      %50 = sbr.rel (0) target = $region33
    $region32: #{tpu_custom_call.1} parent=1 // pred_region
      %51 = dma.done [#allocation6], 1024
    $region33: #{tpu_custom_call.1} parent=1 // pred_fallthru
      _
    %v53 = vld [vmem:[%s0] sm:$0xff]
    %v54 = vld [vmem:[%s0 + $0x8] sm:$0xff]
    %v55 = vld [vmem:[%s1] sm:$0x1]
    %57 = vset.pattern.permute.xlu0 0
    %58 = vperm.xlu0 %57, %v53
    %v59 = vpop.permute.xlu0 %58
    %62 = vset.pattern.permute.xlu0 0
    %63 = vperm.xlu0 %62, %v54
    %v64 = vpop.permute.xlu0 %63
    %v67 = vlaneseq
    %v68 = vshrl.u32 %v67, 7
    %v69 = vsub.s32 0, %v68
    %v70 = vrot.slane %v55, %v69
    %v72 = vmul.f32 %v59, %v70
    %v73 = vmul.f32 %v64, %v70
    %v74 = vand.u32 2147483647, %v72
    %vm75 = vcmp.le.f32.partialorder %v74, 0.7853982
    %vm76 = vcmp.lt.s32.totalorder %v72, 0
    %v77 = vand.u32 %v72, 2139095040
    %v78 = vshrl.u32 %v77, 23
    %v79 = vsub.s32 %v78, 127
    %v80 = vand.u32 2147483647, %v72
    %v81 = vand.u32 %v80, 8388607
    %v82 = vor.u32 %v81, 8388608
    %v83 = vsub.s32 0, %v82
    %v84 = vadd.s32 %v79, 1
    %vm85 = vcmp.gt.s32.totalorder %v84, 0
    %v86 = vsel %vm85, %v84, 0
    %v87 = vshrl.u32 %v86, 5
    %v88 = vand.u32 %v86, 31
    %v89 = vsub.s32 32, %v88
    %v90 = vshrl.u32 683565275, %v89
    %v91 = vshll.u32 683565275, %v88
    %v92 = vshrl.u32 2475754826, %v89
    %v93 = vor.u32 %v91, %v92
    %v94 = vshll.u32 2475754826, %v88
    %v95 = vshrl.u32 2131351028, %v89
    %v96 = vor.u32 %v94, %v95
    %v97 = vshll.u32 2131351028, %v88
    %v98 = vshrl.u32 2102212464, %v89
    %v99 = vor.u32 %v97, %v98
    %v100 = vshll.u32 2102212464, %v88
    %v101 = vshrl.u32 920167782, %v89
    %v102 = vor.u32 %v100, %v101
    %v103 = vshll.u32 920167782, %v88
    %v104 = vshrl.u32 1326507024, %v89
    %v105 = vor.u32 %v103, %v104
    %vm106 = vcmp.lt.s32.totalorder %v87, 1
    %vm107 = vcmp.lt.s32.totalorder %v87, 2
    %vm108 = vcmp.lt.s32.totalorder %v87, 3
    %vm109 = vcmp.lt.s32.totalorder %v87, 4
    %v110 = vsel %vm106, %v90, %v93
    %v111 = vsel %vm109, %v99, 2102212464
    %v112 = vsel %vm108, %v96, %v111
    %v113 = vsel %vm107, %v110, %v112
    %v114 = vsel %vm106, %v93, %v96
    %v115 = vsel %vm109, %v102, 920167782
    %v116 = vsel %vm108, %v99, %v115
    %v117 = vsel %vm107, %v114, %v116
    %v118 = vsel %vm106, %v96, %v99
    %v119 = vsel %vm109, %v105, 1326507024
    %v120 = vsel %vm108, %v102, %v119
    %v121 = vsel %vm107, %v118, %v120
    %v122 = vshll.u32 %v82, 8
    %v123 = vmul.u32.u64.compose %v122, %v121
    %v124 = vextract.low.u32 %v123
    %v125 = vextract.high.u32 %v123
    %v126 = vmul.u32.u64.compose %v122, %v117
    %v127 = vextract.low.u32 %v126
    %v128 = vextract.high.u32 %v126
    %v129 = vmul.u32 %v122, %v113
    %v130 = vadd.s32 %v125, %v127
    %vm131 = vc.u32 %v125, %v127
    %v132 = vadd.s32 %v128, 1
    %v133 = vsel %vm131, %v132, %v128
    %v134 = vadd.s32 %v129, %v133
    %v135 = vadd.s32 %v134, 536870912
    %v136 = vshrl.u32 %v135, 30
    %v137 = vshll.u32 %v136, 30
    %v138 = vsub.s32 %v134, %v137
    %vm139 = vcmp.lt.s32.totalorder %v138, 0
    %v140 = vsub.s32 0, %v138
    %v141 = vsel %vm139, %v140, %v138
    %v142 = vclz %v141
    %v143 = vsub.s32 %v142, 2
    %vm144 = vcmp.gt.s32.totalorder 0, %v143
    %v145 = vsel %vm144, 0, %v143
    %v146 = vsub.s32 32, %v145
    %v147 = vshll.u32 %v138, %v145
    %v148 = vshrl.u32 %v130, %v146
    %v149 = vor.u32 %v147, %v148
    %v150 = vsub.s32 4294967266, %v145
    %v151 = vadd.s32 %v150, 127
    %v152 = vshll.u32 %v151, 23
    %v153 = vor.u32 4788187, %v152
    %v154 = vand.u32 2147483647, %v153
    %v156 = vcvt.s32.f32 %v149
    %v157 = vmul.f32 %v156, %v154
    %v158 = vxor.u32 %v157, 2147483648
    %v159 = vsel %vm76, %v158, %v157
    %v160 = vsub.s32 4, %v136
    %v161 = vsel %vm76, %v160, %v136
    %v162 = vsel %vm75, %v72, %v159
    %v163 = vsel %vm75, 0, %v161
    %v164 = vcosq.f32.pop %v162
    %v165 = vsinq.f32.pop %v162
    %vm166 = vweird.f32 %v72
    %v167 = vand.u32 %v163, 3
    %vm168 = vcmp.lt.s32.totalorder %v167, 2
    %vm169 = vcmp.eq.s32.totalorder %v167, 0
    %v170 = vxor.u32 %v165, 2147483648
    %v171 = vsel %vm169, %v164, %v170
    %vm172 = vcmp.eq.s32.totalorder %v167, 2
    %v173 = vxor.u32 %v164, 2147483648
    %v174 = vsel %vm172, %v173, %v165
    %v175 = vsel %vm168, %v171, %v174
    %v176 = vsel %vm166, nan, %v175
    %v177 = vand.u32 2147483647, %v73
    %vm178 = vcmp.le.f32.partialorder %v177, 0.7853982
    %vm179 = vcmp.lt.s32.totalorder %v73, 0
    %v180 = vand.u32 %v73, 2139095040
    %v181 = vshrl.u32 %v180, 23
    %v182 = vsub.s32 %v181, 127
    %v183 = vand.u32 2147483647, %v73
    %v184 = vand.u32 %v183, 8388607
    %v185 = vor.u32 %v184, 8388608
    %v186 = vsub.s32 0, %v185
    %v187 = vadd.s32 %v182, 1
    %vm188 = vcmp.gt.s32.totalorder %v187, 0
    %v189 = vsel %vm188, %v187, 0
    %v190 = vshrl.u32 %v189, 5
    %v191 = vand.u32 %v189, 31
    %v192 = vsub.s32 32, %v191
    %v193 = vshrl.u32 683565275, %v192
    %v194 = vshll.u32 683565275, %v191
    %v195 = vshrl.u32 2475754826, %v192
    %v196 = vor.u32 %v194, %v195
    %v197 = vshll.u32 2475754826, %v191
    %v198 = vshrl.u32 2131351028, %v192
    %v199 = vor.u32 %v197, %v198
    %v200 = vshll.u32 2131351028, %v191
    %v201 = vshrl.u32 2102212464, %v192
    %v202 = vor.u32 %v200, %v201
    %v203 = vshll.u32 2102212464, %v191
    %v204 = vshrl.u32 920167782, %v192
    %v205 = vor.u32 %v203, %v204
    %v206 = vshll.u32 920167782, %v191
    %v207 = vshrl.u32 1326507024, %v192
    %v208 = vor.u32 %v206, %v207
    %vm209 = vcmp.lt.s32.totalorder %v190, 1
    %vm210 = vcmp.lt.s32.totalorder %v190, 2
    %vm211 = vcmp.lt.s32.totalorder %v190, 3
    %vm212 = vcmp.lt.s32.totalorder %v190, 4
    %v213 = vsel %vm209, %v193, %v196
    %v214 = vsel %vm212, %v202, 2102212464
    %v215 = vsel %vm211, %v199, %v214
    %v216 = vsel %vm210, %v213, %v215
    %v217 = vsel %vm209, %v196, %v199
    %v218 = vsel %vm212, %v205, 920167782
    %v219 = vsel %vm211, %v202, %v218
    %v220 = vsel %vm210, %v217, %v219
    %v221 = vsel %vm209, %v199, %v202
    %v222 = vsel %vm212, %v208, 1326507024
    %v223 = vsel %vm211, %v205, %v222
    %v224 = vsel %vm210, %v221, %v223
    %v225 = vshll.u32 %v185, 8
    %v226 = vmul.u32.u64.compose %v225, %v224
    %v227 = vextract.low.u32 %v226
    %v228 = vextract.high.u32 %v226
    %v229 = vmul.u32.u64.compose %v225, %v220
    %v230 = vextract.low.u32 %v229
    %v231 = vextract.high.u32 %v229
    %v232 = vmul.u32 %v225, %v216
    %v233 = vadd.s32 %v228, %v230
    %vm234 = vc.u32 %v228, %v230
    %v235 = vadd.s32 %v231, 1
    %v236 = vsel %vm234, %v235, %v231
    %v237 = vadd.s32 %v232, %v236
    %v238 = vadd.s32 %v237, 536870912
    %v239 = vshrl.u32 %v238, 30
    %v240 = vshll.u32 %v239, 30
    %v241 = vsub.s32 %v237, %v240
    %vm242 = vcmp.lt.s32.totalorder %v241, 0
    %v243 = vsub.s32 0, %v241
    %v244 = vsel %vm242, %v243, %v241
    %v245 = vclz %v244
    %v246 = vsub.s32 %v245, 2
    %vm247 = vcmp.gt.s32.totalorder 0, %v246
    %v248 = vsel %vm247, 0, %v246
    %v249 = vsub.s32 32, %v248
    %v250 = vshll.u32 %v241, %v248
    %v251 = vshrl.u32 %v233, %v249
    %v252 = vor.u32 %v250, %v251
    %v253 = vsub.s32 4294967266, %v248
    %v254 = vadd.s32 %v253, 127
    %v255 = vshll.u32 %v254, 23
    %v256 = vor.u32 4788187, %v255
    %v257 = vand.u32 2147483647, %v256
    %v259 = vcvt.s32.f32 %v252
    %v260 = vmul.f32 %v259, %v257
    %v261 = vxor.u32 %v260, 2147483648
    %v262 = vsel %vm179, %v261, %v260
    %v263 = vsub.s32 4, %v239
    %v264 = vsel %vm179, %v263, %v239
    %v265 = vsel %vm178, %v73, %v262
    %v266 = vsel %vm178, 0, %v264
    %v267 = vcosq.f32.pop %v265
    %v268 = vsinq.f32.pop %v265
    %vm269 = vweird.f32 %v73
    %v270 = vand.u32 %v266, 3
    %vm271 = vcmp.lt.s32.totalorder %v270, 2
    %vm272 = vcmp.eq.s32.totalorder %v270, 0
    %v273 = vxor.u32 %v268, 2147483648
    %v274 = vsel %vm272, %v267, %v273
    %vm275 = vcmp.eq.s32.totalorder %v270, 2
    %v276 = vxor.u32 %v267, 2147483648
    %v277 = vsel %vm275, %v276, %v268
    %v278 = vsel %vm271, %v274, %v277
    %v279 = vsel %vm269, nan, %v278
    %v280 = vand.u32 2147483647, %v72
    %vm281 = vcmp.le.f32.partialorder %v280, 0.7853982
    %vm282 = vcmp.lt.s32.totalorder %v72, 0
    %v283 = vand.u32 %v72, 2139095040
    %v284 = vshrl.u32 %v283, 23
    %v285 = vsub.s32 %v284, 127
    %v286 = vand.u32 2147483647, %v72
    %v287 = vand.u32 %v286, 8388607
    %v288 = vor.u32 %v287, 8388608
    %v289 = vsub.s32 0, %v288
    %v290 = vadd.s32 %v285, 1
    %vm291 = vcmp.gt.s32.totalorder %v290, 0
    %v292 = vsel %vm291, %v290, 0
    %v293 = vshrl.u32 %v292, 5
    %v294 = vand.u32 %v292, 31
    %v295 = vsub.s32 32, %v294
    %v296 = vshrl.u32 683565275, %v295
    %v297 = vshll.u32 683565275, %v294
    %v298 = vshrl.u32 2475754826, %v295
    %v299 = vor.u32 %v297, %v298
    %v300 = vshll.u32 2475754826, %v294
    %v301 = vshrl.u32 2131351028, %v295
    %v302 = vor.u32 %v300, %v301
    %v303 = vshll.u32 2131351028, %v294
    %v304 = vshrl.u32 2102212464, %v295
    %v305 = vor.u32 %v303, %v304
    %v306 = vshll.u32 2102212464, %v294
    %v307 = vshrl.u32 920167782, %v295
    %v308 = vor.u32 %v306, %v307
    %v309 = vshll.u32 920167782, %v294
    %v310 = vshrl.u32 1326507024, %v295
    %v311 = vor.u32 %v309, %v310
    %vm312 = vcmp.lt.s32.totalorder %v293, 1
    %vm313 = vcmp.lt.s32.totalorder %v293, 2
    %vm314 = vcmp.lt.s32.totalorder %v293, 3
    %vm315 = vcmp.lt.s32.totalorder %v293, 4
    %v316 = vsel %vm312, %v296, %v299
    %v317 = vsel %vm315, %v305, 2102212464
    %v318 = vsel %vm314, %v302, %v317
    %v319 = vsel %vm313, %v316, %v318
    %v320 = vsel %vm312, %v299, %v302
    %v321 = vsel %vm315, %v308, 920167782
    %v322 = vsel %vm314, %v305, %v321
    %v323 = vsel %vm313, %v320, %v322
    %v324 = vsel %vm312, %v302, %v305
    %v325 = vsel %vm315, %v311, 1326507024
    %v326 = vsel %vm314, %v308, %v325
    %v327 = vsel %vm313, %v324, %v326
    %v328 = vshll.u32 %v288, 8
    %v329 = vmul.u32.u64.compose %v328, %v327
    %v330 = vextract.low.u32 %v329
    %v331 = vextract.high.u32 %v329
    %v332 = vmul.u32.u64.compose %v328, %v323
    %v333 = vextract.low.u32 %v332
    %v334 = vextract.high.u32 %v332
    %v335 = vmul.u32 %v328, %v319
    %v336 = vadd.s32 %v331, %v333
    %vm337 = vc.u32 %v331, %v333
    %v338 = vadd.s32 %v334, 1
    %v339 = vsel %vm337, %v338, %v334
    %v340 = vadd.s32 %v335, %v339
    %v341 = vadd.s32 %v340, 536870912
    %v342 = vshrl.u32 %v341, 30
    %v343 = vshll.u32 %v342, 30
    %v344 = vsub.s32 %v340, %v343
    %vm345 = vcmp.lt.s32.totalorder %v344, 0
    %v346 = vsub.s32 0, %v344
    %v347 = vsel %vm345, %v346, %v344
    %v348 = vclz %v347
    %v349 = vsub.s32 %v348, 2
    %vm350 = vcmp.gt.s32.totalorder 0, %v349
    %v351 = vsel %vm350, 0, %v349
    %v352 = vsub.s32 32, %v351
    %v353 = vshll.u32 %v344, %v351
    %v354 = vshrl.u32 %v336, %v352
    %v355 = vor.u32 %v353, %v354
    %v356 = vsub.s32 4294967266, %v351
    %v357 = vadd.s32 %v356, 127
    %v358 = vshll.u32 %v357, 23
    %v359 = vor.u32 4788187, %v358
    %v360 = vand.u32 2147483647, %v359
    %v362 = vcvt.s32.f32 %v355
    %v363 = vmul.f32 %v362, %v360
    %v364 = vxor.u32 %v363, 2147483648
    %v365 = vsel %vm282, %v364, %v363
    %v366 = vsub.s32 4, %v342
    %v367 = vsel %vm282, %v366, %v342
    %v368 = vsel %vm281, %v72, %v365
    %v369 = vsel %vm281, 0, %v367
    %v370 = vcosq.f32.pop %v368
    %v371 = vsinq.f32.pop %v368
    %vm372 = vweird.f32 %v72
    %v373 = vadd.s32 %v369, 3
    %v374 = vand.u32 %v373, 3
    %vm375 = vcmp.lt.s32.totalorder %v374, 2
    %vm376 = vcmp.eq.s32.totalorder %v374, 0
    %v377 = vxor.u32 %v371, 2147483648
    %v378 = vsel %vm376, %v370, %v377
    %vm379 = vcmp.eq.s32.totalorder %v374, 2
    %v380 = vxor.u32 %v370, 2147483648
    %v381 = vsel %vm379, %v380, %v371
    %v382 = vsel %vm375, %v378, %v381
    %v383 = vsel %vm372, nan, %v382
    %v384 = vand.u32 2147483647, %v73
    %vm385 = vcmp.le.f32.partialorder %v384, 0.7853982
    %vm386 = vcmp.lt.s32.totalorder %v73, 0
    %v387 = vand.u32 %v73, 2139095040
    %v388 = vshrl.u32 %v387, 23
    %v389 = vsub.s32 %v388, 127
    %v390 = vand.u32 2147483647, %v73
    %v391 = vand.u32 %v390, 8388607
    %v392 = vor.u32 %v391, 8388608
    %v393 = vsub.s32 0, %v392
    %v394 = vadd.s32 %v389, 1
    %vm395 = vcmp.gt.s32.totalorder %v394, 0
    %v396 = vsel %vm395, %v394, 0
    %v397 = vshrl.u32 %v396, 5
    %v398 = vand.u32 %v396, 31
    %v399 = vsub.s32 32, %v398
    %v400 = vshrl.u32 683565275, %v399
    %v401 = vshll.u32 683565275, %v398
    %v402 = vshrl.u32 2475754826, %v399
    %v403 = vor.u32 %v401, %v402
    %v404 = vshll.u32 2475754826, %v398
    %v405 = vshrl.u32 2131351028, %v399
    %v406 = vor.u32 %v404, %v405
    %v407 = vshll.u32 2131351028, %v398
    %v408 = vshrl.u32 2102212464, %v399
    %v409 = vor.u32 %v407, %v408
    %v410 = vshll.u32 2102212464, %v398
    %v411 = vshrl.u32 920167782, %v399
    %v412 = vor.u32 %v410, %v411
    %v413 = vshll.u32 920167782, %v398
    %v414 = vshrl.u32 1326507024, %v399
    %v415 = vor.u32 %v413, %v414
    %vm416 = vcmp.lt.s32.totalorder %v397, 1
    %vm417 = vcmp.lt.s32.totalorder %v397, 2
    %vm418 = vcmp.lt.s32.totalorder %v397, 3
    %vm419 = vcmp.lt.s32.totalorder %v397, 4
    %v420 = vsel %vm416, %v400, %v403
    %v421 = vsel %vm419, %v409, 2102212464
    %v422 = vsel %vm418, %v406, %v421
    %v423 = vsel %vm417, %v420, %v422
    %v424 = vsel %vm416, %v403, %v406
    %v425 = vsel %vm419, %v412, 920167782
    %v426 = vsel %vm418, %v409, %v425
    %v427 = vsel %vm417, %v424, %v426
    %v428 = vsel %vm416, %v406, %v409
    %v429 = vsel %vm419, %v415, 1326507024
    %v430 = vsel %vm418, %v412, %v429
    %v431 = vsel %vm417, %v428, %v430
    %v432 = vshll.u32 %v392, 8
    %v433 = vmul.u32.u64.compose %v432, %v431
    %v434 = vextract.low.u32 %v433
    %v435 = vextract.high.u32 %v433
    %v436 = vmul.u32.u64.compose %v432, %v427
    %v437 = vextract.low.u32 %v436
    %v438 = vextract.high.u32 %v436
    %v439 = vmul.u32 %v432, %v423
    %v440 = vadd.s32 %v435, %v437
    %vm441 = vc.u32 %v435, %v437
    %v442 = vadd.s32 %v438, 1
    %v443 = vsel %vm441, %v442, %v438
    %v444 = vadd.s32 %v439, %v443
    %v445 = vadd.s32 %v444, 536870912
    %v446 = vshrl.u32 %v445, 30
    %v447 = vshll.u32 %v446, 30
    %v448 = vsub.s32 %v444, %v447
    %vm449 = vcmp.lt.s32.totalorder %v448, 0
    %v450 = vsub.s32 0, %v448
    %v451 = vsel %vm449, %v450, %v448
    %v452 = vclz %v451
    %v453 = vsub.s32 %v452, 2
    %vm454 = vcmp.gt.s32.totalorder 0, %v453
    %v455 = vsel %vm454, 0, %v453
    %v456 = vsub.s32 32, %v455
    %v457 = vshll.u32 %v448, %v455
    %v458 = vshrl.u32 %v440, %v456
    %v459 = vor.u32 %v457, %v458
    %v460 = vsub.s32 4294967266, %v455
    %v461 = vadd.s32 %v460, 127
    %v462 = vshll.u32 %v461, 23
    %v463 = vor.u32 4788187, %v462
    %v464 = vand.u32 2147483647, %v463
    %v466 = vcvt.s32.f32 %v459
    %v467 = vmul.f32 %v466, %v464
    %v468 = vxor.u32 %v467, 2147483648
    %v469 = vsel %vm386, %v468, %v467
    %v470 = vsub.s32 4, %v446
    %v471 = vsel %vm386, %v470, %v446
    %v472 = vsel %vm385, %v73, %v469
    %v473 = vsel %vm385, 0, %v471
    %v474 = vcosq.f32.pop %v472
    %v475 = vsinq.f32.pop %v472
    %vm476 = vweird.f32 %v73
    %v477 = vadd.s32 %v473, 3
    %v478 = vand.u32 %v477, 3
    %vm479 = vcmp.lt.s32.totalorder %v478, 2
    %vm480 = vcmp.eq.s32.totalorder %v478, 0
    %v481 = vxor.u32 %v475, 2147483648
    %v482 = vsel %vm480, %v474, %v481
    %vm483 = vcmp.eq.s32.totalorder %v478, 2
    %v484 = vxor.u32 %v474, 2147483648
    %v485 = vsel %vm483, %v484, %v475
    %v486 = vsel %vm479, %v482, %v485
    %v487 = vsel %vm476, nan, %v486
    %v488 = vpack.c.bf16 %v279, %v176
    %v489 = vpack.c.bf16 %v487, %v383
    %v490 = vld [vmem:[#allocation2] sm:$0xf]
    %v491 = vld [vmem:[#allocation2 + $0x4] sm:$0xf]
    %v492 = vld [vmem:[#allocation2 + $0x8] sm:$0xf]
    %v493 = vld [vmem:[#allocation2 + $0xc] sm:$0xf]
    %v494 = vld [vmem:[#allocation2 + $0x10] sm:$0xf]
    %v495 = vld [vmem:[#allocation2 + $0x14] sm:$0xf]
    %v496 = vld [vmem:[#allocation2 + $0x18] sm:$0xf]
    %v497 = vld [vmem:[#allocation2 + $0x1c] sm:$0xf]
    %v498 = vld [vmem:[#allocation2 + $0x20] sm:$0xf]
    %v499 = vld [vmem:[#allocation2 + $0x24] sm:$0xf]
    %v500 = vld [vmem:[#allocation2 + $0x28] sm:$0xf]
    %v501 = vld [vmem:[#allocation2 + $0x2c] sm:$0xf]
    %v502 = vld [vmem:[#allocation2 + $0x30] sm:$0xf]
    %v503 = vld [vmem:[#allocation2 + $0x34] sm:$0xf]
    %v504 = vld [vmem:[#allocation2 + $0x38] sm:$0xf]
    %v505 = vld [vmem:[#allocation2 + $0x3c] sm:$0xf]
    %v506 = vld [vmem:[#allocation2 + $0x40] sm:$0xf]
    %v507 = vld [vmem:[#allocation2 + $0x44] sm:$0xf]
    %v508 = vld [vmem:[#allocation2 + $0x48] sm:$0xf]
    %v509 = vld [vmem:[#allocation2 + $0x4c] sm:$0xf]
    %v510 = vld [vmem:[#allocation2 + $0x50] sm:$0xf]
    %v511 = vld [vmem:[#allocation2 + $0x54] sm:$0xf]
    %v512 = vld [vmem:[#allocation2 + $0x58] sm:$0xf]
    %v513 = vld [vmem:[#allocation2 + $0x5c] sm:$0xf]
    %v514 = vld [vmem:[#allocation2 + $0x60] sm:$0xf]
    %v515 = vld [vmem:[#allocation2 + $0x64] sm:$0xf]
    %v516 = vld [vmem:[#allocation2 + $0x68] sm:$0xf]
    %v517 = vld [vmem:[#allocation2 + $0x6c] sm:$0xf]
    %v518 = vld [vmem:[#allocation2 + $0x70] sm:$0xf]
    %v519 = vld [vmem:[#allocation2 + $0x74] sm:$0xf]
    %v520 = vld [vmem:[#allocation2 + $0x78] sm:$0xf]
    %v521 = vld [vmem:[#allocation2 + $0x7c] sm:$0xf]
    %v522 = vld [vmem:[%s3] sm:$0x1]
    %v524 = vlaneseq
    %v525 = vshrl.u32 %v524, 7
    %v526 = vsub.s32 0, %v525
    %v527 = vrot.slane %v522, %v526
    %v561 = vunpack.c.l.b16 %v490
    %v562 = vunpack.c.l.b16 %v491
    %v563 = vunpack.c.l.b16 %v492
    %v564 = vunpack.c.l.b16 %v493
    %v565 = vunpack.c.l.b16 %v494
    %v566 = vunpack.c.l.b16 %v495
    %v567 = vunpack.c.l.b16 %v496
    %v568 = vunpack.c.l.b16 %v497
    %v569 = vunpack.c.l.b16 %v498
    %v570 = vunpack.c.l.b16 %v499
    %v571 = vunpack.c.l.b16 %v500
    %v572 = vunpack.c.l.b16 %v501
    %v573 = vunpack.c.l.b16 %v502
    %v574 = vunpack.c.l.b16 %v503
    %v575 = vunpack.c.l.b16 %v504
    %v576 = vunpack.c.l.b16 %v505
    %v577 = vunpack.c.l.b16 %v506
    %v578 = vunpack.c.l.b16 %v507
    %v579 = vunpack.c.l.b16 %v508
    %v580 = vunpack.c.l.b16 %v509
    %v581 = vunpack.c.l.b16 %v510
    %v582 = vunpack.c.l.b16 %v511
    %v583 = vunpack.c.l.b16 %v512
    %v584 = vunpack.c.l.b16 %v513
    %v585 = vunpack.c.l.b16 %v514
    %v586 = vunpack.c.l.b16 %v515
    %v587 = vunpack.c.l.b16 %v516
    %v588 = vunpack.c.l.b16 %v517
    %v589 = vunpack.c.l.b16 %v518
    %v590 = vunpack.c.l.b16 %v519
    %v591 = vunpack.c.l.b16 %v520
    %v592 = vunpack.c.l.b16 %v521
    %v593 = vpack.c.b16 %v562, %v561
    %v594 = vpack.c.b16 %v564, %v563
    %v595 = vpack.c.b16 %v566, %v565
    %v596 = vpack.c.b16 %v568, %v567
    %v597 = vpack.c.b16 %v570, %v569
    %v598 = vpack.c.b16 %v572, %v571
    %v599 = vpack.c.b16 %v574, %v573
    %v600 = vpack.c.b16 %v576, %v575
    %v601 = vpack.c.b16 %v578, %v577
    %v602 = vpack.c.b16 %v580, %v579
    %v603 = vpack.c.b16 %v582, %v581
    %v604 = vpack.c.b16 %v584, %v583
    %v605 = vpack.c.b16 %v586, %v585
    %v606 = vpack.c.b16 %v588, %v587
    %v607 = vpack.c.b16 %v590, %v589
    %v608 = vpack.c.b16 %v592, %v591
    %625 = vmatprep.subr.bf16.mxu0 0
    %626 = vmatpush1.bf16.msra.mxu0 %v593
    %627 = vmatprep.subr.bf16.mxu0 0
    %628 = vmatpush1.bf16.msra.mxu0 %v594
    %629 = vmatprep.subr.bf16.mxu0 0
    %630 = vmatpush1.bf16.msra.mxu0 %v595
    %631 = vmatprep.subr.bf16.mxu0 0
    %632 = vmatpush1.bf16.msra.mxu0 %v596
    %633 = vmatprep.subr.bf16.mxu0 0
    %634 = vmatpush1.bf16.msra.mxu0 %v597
    %635 = vmatprep.subr.bf16.mxu0 0
    %636 = vmatpush1.bf16.msra.mxu0 %v598
    %637 = vmatprep.subr.bf16.mxu0 0
    %638 = vmatpush1.bf16.msra.mxu0 %v599
    %639 = vmatprep.subr.bf16.mxu0 0
    %640 = vmatpush1.bf16.msra.mxu0 %v600
    %641 = vmatprep.subr.bf16.mxu0 0
    %642 = vmatpush1.bf16.msra.mxu0 %v601
    %643 = vmatprep.subr.bf16.mxu0 0
    %644 = vmatpush1.bf16.msra.mxu0 %v602
    %645 = vmatprep.subr.bf16.mxu0 0
    %646 = vmatpush1.bf16.msra.mxu0 %v603
    %647 = vmatprep.subr.bf16.mxu0 0
    %648 = vmatpush1.bf16.msra.mxu0 %v604
    %649 = vmatprep.subr.bf16.mxu0 0
    %650 = vmatpush1.bf16.msra.mxu0 %v605
    %651 = vmatprep.subr.bf16.mxu0 0
    %652 = vmatpush1.bf16.msra.mxu0 %v606
    %653 = vmatprep.subr.bf16.mxu0 0
    %654 = vmatpush1.bf16.msra.mxu0 %v607
    %655 = vmatprep.subr.bf16.mxu0 0
    %656 = vmatpush1.bf16.msra.mxu0 %v608
    %657 = vmatprep.mubr.bf16.mxu0 %v489
    %658 = vmatmul.mubr.bf16.gmra.mrb[0].mxu0 %v488
    %v659 = vpop.f32.mrb[0].mxu0
    %v660 = vadd.f32 %v527, %v659
    %v661 = vpop.f32.mrb[0].mxu0
    %v662 = vpop.f32.mrb[0].mxu0
    %v663 = vadd.f32 %v527, %v662
    %v664 = vpop.f32.mrb[0].mxu0
    %665 = vdwg.mxu0
    %v666 = vxor.u32 %v660, 2147483648
    %v667 = vxor.u32 %v663, 2147483648
    %v668 = vmul.f32 %v666, 1.442695
    %v669 = vpow.pop %v668
    %v670 = vmul.f32 %v667, 1.442695
    %v671 = vpow.pop %v670
    %v672 = vadd.f32 %v669, 1.0
    %v673 = vadd.f32 %v671, 1.0
    %v674 = vrcp.pop %v672
    %v675 = vmul.f32 1.0, %v674
    %v676 = vrcp.pop %v673
    %v677 = vmul.f32 1.0, %v676
    %v678 = vmul.f32 %v660, %v675
    %v679 = vmul.f32 %v663, %v677
    %v680 = vpack.c.bf16 %v679, %v678
    %v681 = vld [vmem:[#allocation5] sm:$0xf]
    %v682 = vld [vmem:[#allocation5 + $0x4] sm:$0xf]
    %v683 = vld [vmem:[#allocation5 + $0x8] sm:$0xf]
    %v684 = vld [vmem:[#allocation5 + $0xc] sm:$0xf]
    %v685 = vld [vmem:[#allocation5 + $0x10] sm:$0xf]
    %v686 = vld [vmem:[#allocation5 + $0x14] sm:$0xf]
    %v687 = vld [vmem:[#allocation5 + $0x18] sm:$0xf]
    %v688 = vld [vmem:[#allocation5 + $0x1c] sm:$0xf]
    %v689 = vld [vmem:[#allocation5 + $0x20] sm:$0xf]
    %v690 = vld [vmem:[#allocation5 + $0x24] sm:$0xf]
    %v691 = vld [vmem:[#allocation5 + $0x28] sm:$0xf]
    %v692 = vld [vmem:[#allocation5 + $0x2c] sm:$0xf]
    %v693 = vld [vmem:[#allocation5 + $0x30] sm:$0xf]
    %v694 = vld [vmem:[#allocation5 + $0x34] sm:$0xf]
    %v695 = vld [vmem:[#allocation5 + $0x38] sm:$0xf]
    %v696 = vld [vmem:[#allocation5 + $0x3c] sm:$0xf]
    %v697 = vld [vmem:[%s5] sm:$0x1]
    %v699 = vlaneseq
    %v700 = vshrl.u32 %v699, 7
    %v701 = vsub.s32 0, %v700
    %v702 = vrot.slane %v697, %v701
    %v720 = vunpack.c.l.b16 %v681
    %v721 = vunpack.c.l.b16 %v682
    %v722 = vunpack.c.l.b16 %v683
    %v723 = vunpack.c.l.b16 %v684
    %v724 = vunpack.c.l.b16 %v685
    %v725 = vunpack.c.l.b16 %v686
    %v726 = vunpack.c.l.b16 %v687
    %v727 = vunpack.c.l.b16 %v688
    %v728 = vunpack.c.l.b16 %v689
    %v729 = vunpack.c.l.b16 %v690
    %v730 = vunpack.c.l.b16 %v691
    %v731 = vunpack.c.l.b16 %v692
    %v732 = vunpack.c.l.b16 %v693
    %v733 = vunpack.c.l.b16 %v694
    %v734 = vunpack.c.l.b16 %v695
    %v735 = vunpack.c.l.b16 %v696
    %v736 = vpack.c.b16 %v721, %v720
    %v737 = vpack.c.b16 %v723, %v722
    %v738 = vpack.c.b16 %v725, %v724
    %v739 = vpack.c.b16 %v727, %v726
    %v740 = vpack.c.b16 %v729, %v728
    %v741 = vpack.c.b16 %v731, %v730
    %v742 = vpack.c.b16 %v733, %v732
    %v743 = vpack.c.b16 %v735, %v734
    %752 = vmatprep.subr.bf16.mxu0 0
    %753 = vmatpush1.bf16.msra.mxu0 %v736
    %754 = vmatprep.subr.bf16.mxu0 0
    %755 = vmatpush1.bf16.msra.mxu0 %v737
    %756 = vmatprep.subr.bf16.mxu0 0
    %757 = vmatpush1.bf16.msra.mxu0 %v738
    %758 = vmatprep.subr.bf16.mxu0 0
    %759 = vmatpush1.bf16.msra.mxu0 %v739
    %760 = vmatprep.subr.bf16.mxu0 0
    %761 = vmatpush1.bf16.msra.mxu0 %v740
    %762 = vmatprep.subr.bf16.mxu0 0
    %763 = vmatpush1.bf16.msra.mxu0 %v741
    %764 = vmatprep.subr.bf16.mxu0 0
    %765 = vmatpush1.bf16.msra.mxu0 %v742
    %766 = vmatprep.subr.bf16.mxu0 0
    %767 = vmatpush1.bf16.msra.mxu0 %v743
    %768 = vmatprep.subr.bf16.mxu0 0
    %769 = vmatpush1.bf16.msra.mxu0 0
    %770 = vmatprep.subr.bf16.mxu0 0
    %771 = vmatpush1.bf16.msra.mxu0 0
    %772 = vmatprep.subr.bf16.mxu0 0
    %773 = vmatpush1.bf16.msra.mxu0 0
    %774 = vmatprep.subr.bf16.mxu0 0
    %775 = vmatpush1.bf16.msra.mxu0 0
    %776 = vmatprep.subr.bf16.mxu0 0
    %777 = vmatpush1.bf16.msra.mxu0 0
    %778 = vmatprep.subr.bf16.mxu0 0
    %779 = vmatpush1.bf16.msra.mxu0 0
    %780 = vmatprep.subr.bf16.mxu0 0
    %781 = vmatpush1.bf16.msra.mxu0 0
    %782 = vmatprep.subr.bf16.mxu0 0
    %783 = vmatpush1.bf16.msra.mxu0 0
    %784 = vmatprep.mubr.bf16.mxu0 0
    %785 = vmatmul.mubr.bf16.gmra.mrb[0].mxu0 %v680
    %v786 = vpop.f32.mrb[0].mxu0
    %v787 = vadd.f32 %v702, %v786
    %v788 = vpop.f32.mrb[0].mxu0
    %v789 = vpop.f32.mrb[0].mxu0
    %v790 = vadd.f32 %v702, %v789
    %v791 = vpop.f32.mrb[0].mxu0
    %792 = vdwg.mxu0
    %793 = vst [vmem:[#allocation7] sm:$0xff] %v787
    %794 = vst [vmem:[#allocation7 + $0x8] sm:$0xff] %v790
    // Predicated region
    $region34: #{tpu_custom_call.1} parent=1 // pred_check
      _
    $region35: #{tpu_custom_call.1} parent=1 // pred_check_branch
      %796 = sbr.rel (0) target = $region37
    $region36: #{tpu_custom_call.1} parent=1 // pred_region
      %s798 = ssub.s32 256, 256
      %799 = vsyncadd [#allocation4], %s798
      %s800 = sshll.u32 [#allocation7], 4
      %s801 = int_to_ptr.vmem [resolvable:$true] %s800
      %806 = dma.vmem_to_hbm [thread:$0]  %s801, 256, %s6, [#allocation4], 128, 128, 8
    $region37: #{tpu_custom_call.1} parent=1 // pred_fallthru
      _
    // Predicated region
    $region38: #{tpu_custom_call.1} parent=1 // pred_check
      _
    $region39: #{tpu_custom_call.1} parent=1 // pred_check_branch
      %808 = sbr.rel (0) target = $region41
    $region40: #{tpu_custom_call.1} parent=1 // pred_region
      %809 = dma.done [#allocation4], 256
    $region41: #{tpu_custom_call.1} parent=1 // pred_fallthru
      _
    %810 = vsyncpa [#allocation3], 1
    %811 = vsyncpa [#allocation6], 1
    %812 = vsyncpa [#allocation4], 1

</llo_original>
